<compile_context>
chip_gen: v7x
topology: tpu7x:2x2x1
jax: 0.10.0
libtpu: 0.0.40
codegen_flags: <defaults>
</compile_context>

<pallas_src>
import functools

import jax
import jax.numpy as jnp
from jax.experimental import pallas as pl
from jax.experimental.pallas import tpu as pltpu


# --------------------------------------------------------------------------
# Pass 1: coordinate normalization + flat voxel indices (tiny, grid = (B,))
# --------------------------------------------------------------------------
def _coords_kernel(coords_ref, norm_ref, idx_ref, *, r, normalize, eps):
    # coords_ref: (1, 3, N); norm_ref: (1, 3, N); idx_ref: (1, 1, N) int32
    c = coords_ref[0].astype(jnp.float32)                       # (3, N)
    c = c - jnp.mean(c, axis=1, keepdims=True)                  # center per batch
    if normalize:
        nrm = jnp.sqrt(jnp.sum(c * c, axis=0, keepdims=True))   # (1, N)
        denom = jnp.max(nrm, axis=1, keepdims=True) * 2.0 + eps  # (1, 1)
        c = c / denom + 0.5
    else:
        c = (c + 1.0) * 0.5
    c = jnp.clip(c * r, 0.0, r - 1.0)                           # returned norm_coords
    norm_ref[0] = c.astype(norm_ref.dtype)

    v = jnp.round(c).astype(jnp.int32)                          # (3, N), in [0, r-1]
    flat = v[0:1] * (r * r) + v[1:2] * r + v[2:3]               # (1, N)
    idx_ref[0] = flat


# --------------------------------------------------------------------------
# Pass 2: avg_voxelize as a one-hot matmul, tiled over the voxel axis
# --------------------------------------------------------------------------
def _avg_voxelize_kernel(feat_ref, idx_ref, out_ref):
    # feat_ref: (1, C, N); idx_ref: (1, 1, N) int32; out_ref: (1, C, tv)
    v_blk = pl.program_id(1)
    feats = feat_ref[0]                                         # (C, N), input dtype
    idx = idx_ref[0]                                            # (1, N) int32
    n_pts = feats.shape[1]
    tv = out_ref.shape[2]
    base = v_blk * tv

    # one-hot^T: (tv, N); row j, col n == (point n falls in voxel base + j).
    # Built with voxel ids on sublanes so the (1, N) index vector broadcasts
    # without any cross-lane transpose.
    voxel_row = jax.lax.broadcasted_iota(jnp.int32, (tv, n_pts), 0) + base
    onehot_t = (voxel_row == idx).astype(feats.dtype)           # (tv, N)

    # sums[c, j] = sum_n feats[c, n] * onehot_t[j, n]   (A @ B^T on the MXU)
    dims = (((1,), (1,)), ((), ()))
    sums = jax.lax.dot_general(
        feats, onehot_t, dims,
        precision=jax.lax.Precision.HIGHEST,
        preferred_element_type=jnp.float32)                     # (C, tv)
    counts = jax.lax.dot_general(
        jnp.ones((1, n_pts), feats.dtype), onehot_t, dims,
        precision=jax.lax.Precision.HIGHEST,
        preferred_element_type=jnp.float32)                     # (1, tv)

    # Empty voxels: count 0 -> divide by 1 -> output 0 (matches avg_voxelize).
    out_ref[0] = (sums / jnp.maximum(counts, 1.0)).astype(out_ref.dtype)


def _pick_voxel_tile(v_padded, c, n, dtype_bytes,
                     budget_bytes=12 * 1024 * 1024, max_tile=2048):
    """Largest multiple-of-128 divisor of v_padded whose per-step working set
    (double-buffered blocks + the (tv, N) one-hot temporary) fits the budget.
    12 MiB keeps us well inside the 32 MiB scoped limit and v7x's 64 MiB VMEM."""
    n128 = v_padded // 128
    best = 128
    for k in range(1, n128 + 1):
        if n128 % k:
            continue
        tv = 128 * k
        if tv > max_tile:
            break
        work = (2 * (c * n * dtype_bytes + n * 4)      # input blocks (x2 buffers)
                + 2 * c * tv * dtype_bytes             # output blocks (x2 buffers)
                + tv * n * 4)                          # one-hot temporary
        if work <= budget_bytes:
            best = tv
    return best


def voxelize_forward(features, coords, resolution, normalize=True, eps=0.0):
    """features: (B, C, N); coords: (B, 3, N).
    Returns (voxels (B, C, r, r, r), norm_coords (B, 3, N))."""
    B, C, N = features.shape
    r = int(resolution)
    V = r ** 3
    coords = jax.lax.stop_gradient(coords)              # coords.detach()

    # ---------------- pass 1: coords -> norm_coords, flat voxel ids ----------
    norm_coords, vox_idx = pl.pallas_call(
        functools.partial(_coords_kernel, r=r, normalize=normalize, eps=float(eps)),
        out_shape=(jax.ShapeDtypeStruct((B, 3, N), coords.dtype),
                   jax.ShapeDtypeStruct((B, 1, N), jnp.int32)),
        grid_spec=pltpu.PrefetchScalarGridSpec(
            num_scalar_prefetch=0,
            grid=(B,),
            in_specs=[pl.BlockSpec((1, 3, N), lambda b: (b, 0, 0))],
            out_specs=[pl.BlockSpec((1, 3, N), lambda b: (b, 0, 0)),
                       pl.BlockSpec((1, 1, N), lambda b: (b, 0, 0))]),
        compiler_params=pltpu.CompilerParams(
            dimension_semantics=("parallel",),
            vmem_limit_bytes=32 * 1024 * 1024),
    )(coords)

    # ---------------- pass 2: avg-scatter features into the voxel grid -------
    dtype_bytes = features.dtype.itemsize
    v_padded = max(128, pl.cdiv(V, 128) * 128)          # lane-dense output slab
    tv = _pick_voxel_tile(v_padded, C, N, dtype_bytes)
    n_v = v_padded // tv

    cost = pl.CostEstimate(
        flops=2 * B * (C + 1) * N * v_padded,
        transcendentals=0,
        bytes_accessed=(B * C * N + B * N + B * C * v_padded) * dtype_bytes)

    vox_flat = pl.pallas_call(
        _avg_voxelize_kernel,
        out_shape=jax.ShapeDtypeStruct((B, C, v_padded), features.dtype),
        grid_spec=pltpu.PrefetchScalarGridSpec(
            num_scalar_prefetch=0,
            grid=(B, n_v),
            in_specs=[pl.BlockSpec((1, C, N), lambda b, v: (b, 0, 0)),
                      pl.BlockSpec((1, 1, N), lambda b, v: (b, 0, 0))],
            out_specs=pl.BlockSpec((1, C, tv), lambda b, v: (b, 0, v))),
        compiler_params=pltpu.CompilerParams(
            # Both axes independent -> both v7x TensorCores usable at batch 1.
            dimension_semantics=("parallel", "parallel"),
            vmem_limit_bytes=32 * 1024 * 1024),
        cost_estimate=cost,
    )(features, vox_idx)

    vox = vox_flat[:, :, :V].reshape(B, C, r, r, r)
    return vox, norm_coords


# --------------------------------------------------------------------------
# Pure-JAX reference
# --------------------------------------------------------------------------
def voxelize_reference(features, coords, resolution, normalize=True, eps=0.0):
    r = int(resolution)
    B, C, N = features.shape
    nc = coords - coords.mean(axis=2, keepdims=True)
    if normalize:
        denom = (jnp.linalg.norm(nc, axis=1, keepdims=True)
                 .max(axis=2, keepdims=True) * 2.0 + eps)
        nc = nc / denom + 0.5
    else:
        nc = (nc + 1.0) / 2.0
    nc = jnp.clip(nc * r, 0.0, r - 1.0)
    vox = jnp.round(nc).astype(jnp.int32)
    flat = vox[:, 0] * (r * r) + vox[:, 1] * r + vox[:, 2]       # (B, N)
    onehot = jax.nn.one_hot(flat, r ** 3, dtype=jnp.float32)     # (B, N, V)
    sums = jnp.einsum('bcn,bnv->bcv', features.astype(jnp.float32), onehot,
                      precision=jax.lax.Precision.HIGHEST)
    counts = onehot.sum(axis=1)                                  # (B, V)
    out = sums / jnp.maximum(counts, 1.0)[:, None, :]
    return out.reshape(B, C, r, r, r).astype(features.dtype), nc


if __name__ == "__main__":
    B, C, N = 2, 8, 128
    resolution = 16           # V = 4096 voxels -> 2 voxel tiles of 2048
    key = jax.random.PRNGKey(0)
    kf, kc = jax.random.split(key)
    features = jax.random.normal(kf, (B, C, N), dtype=jnp.float32)
    coords = jax.random.normal(kc, (B, 3, N), dtype=jnp.float32)

    vox, norm_coords = voxelize_forward(features, coords, resolution,
                                        normalize=True, eps=0.0)
    vox, norm_coords = jax.block_until_ready((vox, norm_coords))

    vox_ref, norm_ref = voxelize_reference(features, coords, resolution,
                                           normalize=True, eps=0.0)
    assert vox.shape == (B, C, resolution, resolution, resolution)
    assert norm_coords.shape == (B, 3, N)
    assert jnp.allclose(norm_coords, norm_ref, atol=1e-5, rtol=1e-5)
    assert jnp.allclose(vox, vox_ref, atol=1e-4, rtol=1e-4)

    print("KERNEL_OK")
</pallas_src>

<mosaic_0001>
module attributes {stable_mosaic.version = 11 : i64} {
  func.func @_coords_kernel(%arg0: i32, %arg1: memref<1x3x128xf32, #tpu.memory_space<vmem>>, %arg2: memref<1x3x128xf32, #tpu.memory_space<vmem>>, %arg3: memref<1x1x128xi32, #tpu.memory_space<vmem>>) attributes {dimension_semantics = [#tpu.dimension_semantics<parallel>], iteration_bounds = array<i64: 2>, scalar_prefetch = 0 : i64, scratch_operands = 0 : i64, tpu.core_type = #tpu.core_type<tc>, window_params = [{transform_indices = @transform_0, window_bounds = array<i64: 1, 3, 128>}, {transform_indices = @transform_1, window_bounds = array<i64: 1, 3, 128>}, {transform_indices = @transform_2, window_bounds = array<i64: 1, 1, 128>}]} {
    %c0 = arith.constant 0 : index
    %c0_0 = arith.constant 0 : index
    %c0_1 = arith.constant 0 : index
    %0 = vector.load %arg1[%c0, %c0_0, %c0_1] : memref<1x3x128xf32, #tpu.memory_space<vmem>>, vector<1x3x128xf32>
    %1 = vector.shape_cast %0 : vector<1x3x128xf32> to vector<3x128xf32>
    %cst = arith.constant dense<0.000000e+00> : vector<3xf32>
    %2 = vector.multi_reduction <add>, %1, %cst [1] : vector<3x128xf32> to vector<3xf32>
    %3 = vector.shape_cast %2 : vector<3xf32> to vector<3x1xf32>
    %cst_2 = arith.constant 1.280000e+02 : f32
    %4 = vector.broadcast %cst_2 : f32 to vector<3x1xf32>
    %5 = arith.divf %3, %4 : vector<3x1xf32>
    %6 = vector.broadcast %5 : vector<3x1xf32> to vector<3x128xf32>
    %7 = arith.subf %1, %6 : vector<3x128xf32>
    %8 = arith.mulf %7, %7 : vector<3x128xf32>
    %cst_3 = arith.constant dense<0.000000e+00> : vector<128xf32>
    %9 = vector.multi_reduction <add>, %8, %cst_3 [0] : vector<3x128xf32> to vector<128xf32>
    %10 = vector.shape_cast %9 : vector<128xf32> to vector<1x128xf32>
    %11 = math.sqrt %10 : vector<1x128xf32>
    %cst_4 = arith.constant dense<0xFF800000> : vector<1xf32>
    %12 = vector.multi_reduction <maximumf>, %11, %cst_4 [1] : vector<1x128xf32> to vector<1xf32>
    %13 = vector.shape_cast %12 : vector<1xf32> to vector<1x1xf32>
    %cst_5 = arith.constant 2.000000e+00 : f32
    %14 = vector.broadcast %cst_5 : f32 to vector<1x1xf32>
    %15 = arith.mulf %13, %14 : vector<1x1xf32>
    %cst_6 = arith.constant 0.000000e+00 : f32
    %16 = vector.broadcast %cst_6 : f32 to vector<1x1xf32>
    %17 = arith.addf %15, %16 : vector<1x1xf32>
    %18 = vector.broadcast %17 : vector<1x1xf32> to vector<3x128xf32>
    %19 = arith.divf %7, %18 : vector<3x128xf32>
    %cst_7 = arith.constant 5.000000e-01 : f32
    %20 = vector.broadcast %cst_7 : f32 to vector<3x128xf32>
    %21 = arith.addf %19, %20 : vector<3x128xf32>
    %cst_8 = arith.constant 1.600000e+01 : f32
    %22 = vector.broadcast %cst_8 : f32 to vector<3x128xf32>
    %23 = arith.mulf %21, %22 : vector<3x128xf32>
    %cst_9 = arith.constant 0.000000e+00 : f32
    %cst_10 = arith.constant 1.500000e+01 : f32
    %24 = vector.broadcast %cst_9 : f32 to vector<3x128xf32>
    %25 = arith.maximumf %24, %23 : vector<3x128xf32>
    %26 = vector.broadcast %cst_10 : f32 to vector<3x128xf32>
    %27 = arith.minimumf %26, %25 : vector<3x128xf32>
    %c0_11 = arith.constant 0 : index
    %c0_12 = arith.constant 0 : index
    %c0_13 = arith.constant 0 : index
    %28 = vector.load %arg2[%c0_11, %c0_12, %c0_13] : memref<1x3x128xf32, #tpu.memory_space<vmem>>, vector<1x3x128xf32>
    %29 = vector.shape_cast %28 : vector<1x3x128xf32> to vector<3x128xf32>
    %30 = vector.shape_cast %27 : vector<3x128xf32> to vector<1x3x128xf32>
    tpu.vector_store %arg2[%c0_11, %c0_12, %c0_13], %30 {strides = array<i32>} : memref<1x3x128xf32, #tpu.memory_space<vmem>>, vector<1x3x128xf32>,
    %31 = math.roundeven %27 : vector<3x128xf32>
    %32 = arith.fptosi %31 : vector<3x128xf32> to vector<3x128xi32>
    %33 = vector.extract_strided_slice %32 {offsets = [0, 0], sizes = [1, 128], strides = [1, 1]} : vector<3x128xi32> to vector<1x128xi32>
    %c256_i32 = arith.constant 256 : i32
    %34 = vector.broadcast %c256_i32 : i32 to vector<1x128xi32>
    %35 = arith.muli %33, %34 : vector<1x128xi32>
    %36 = vector.extract_strided_slice %32 {offsets = [1, 0], sizes = [1, 128], strides = [1, 1]} : vector<3x128xi32> to vector<1x128xi32>
    %c16_i32 = arith.constant 16 : i32
    %37 = vector.broadcast %c16_i32 : i32 to vector<1x128xi32>
    %38 = arith.muli %36, %37 : vector<1x128xi32>
    %39 = arith.addi %35, %38 : vector<1x128xi32>
    %40 = vector.extract_strided_slice %32 {offsets = [2, 0], sizes = [1, 128], strides = [1, 1]} : vector<3x128xi32> to vector<1x128xi32>
    %41 = arith.addi %39, %40 : vector<1x128xi32>
    %c0_14 = arith.constant 0 : index
    %c0_15 = arith.constant 0 : index
    %c0_16 = arith.constant 0 : index
    %42 = vector.load %arg3[%c0_14, %c0_15, %c0_16] : memref<1x1x128xi32, #tpu.memory_space<vmem>>, vector<1x1x128xi32>
    %43 = vector.shape_cast %42 : vector<1x1x128xi32> to vector<1x128xi32>
    %44 = vector.shape_cast %41 : vector<1x128xi32> to vector<1x1x128xi32>
    tpu.vector_store %arg3[%c0_14, %c0_15, %c0_16], %44 {strides = array<i32>} : memref<1x1x128xi32, #tpu.memory_space<vmem>>, vector<1x1x128xi32>,
    return
  }
  func.func @transform_0(%arg0: i32) -> (i32, i32, i32) {
    %c0_i32 = arith.constant 0 : i32
    %c0_i32_0 = arith.constant 0 : i32
    %c0_i32_1 = arith.constant 0 : i32
    return %arg0, %c0_i32, %c0_i32_0 : i32, i32, i32
  }
  func.func @transform_1(%arg0: i32) -> (i32, i32, i32) {
    %c0_i32 = arith.constant 0 : i32
    %c0_i32_0 = arith.constant 0 : i32
    %c0_i32_1 = arith.constant 0 : i32
    return %arg0, %c0_i32, %c0_i32_0 : i32, i32, i32
  }
  func.func @transform_2(%arg0: i32) -> (i32, i32, i32) {
    %c0_i32 = arith.constant 0 : i32
    %c0_i32_0 = arith.constant 0 : i32
    %c0_i32_1 = arith.constant 0 : i32
    return %arg0, %c0_i32, %c0_i32_0 : i32, i32, i32
  }
}

</mosaic_0001>

<llo_original>
// kernel: tpu_custom_call.1
$region0: #{tpu_custom_call.1}
  #allocation0 [shape = 'u32[]', space=smem, size = 0x4, offset = 0x4, fixed_abs, tag = 'smem constant byte address 0x4 - core index']
  #allocation1 [shape = 'u32[144,128]{1,0:T(1,128)}', space=vmem, size = 0x12000, scoped, tag = 'internal scratch']
  %s0 = inlined_call_operand.vmem [shape: f32[2,3,128], index: 0, kind: input, shape index: {}]
  %s1 = inlined_call_operand.vmem [shape: f32[2,3,128], index: 1, kind: output, shape index: {0}]
  %s2 = inlined_call_operand.hbm [shape: s32[2,1,128], index: 2, kind: output, shape index: {1}]
  %3 = xla_tuple %s1, %s2
  %s4 = sld [smem:[#allocation0]]
  $region45: #{tpu_custom_call.1} parent=0
    _
  %s6 = ssub.s32 1, %s4
  %s7 = scalar_select 0, %s6, %s4
  $region1: #{tpu_custom_call.1} parent=0
    #allocation2 [shape = 'u8[1024]{0}', space=vmem, size = 0x400, scoped, tag = 'output window, operand 1']
    #allocation3 [shape = 's32[2]{0}', space=sflag, size = 0x8, scoped, tag = 'scoped memory for tpu_custom_call.1']
    %8 = vsyncpa [#allocation3], 0
    %s9 = scalar_lea.sflag [#allocation3], 1
    %10 = vsyncpa %s9, 0
    loop: start=0, step=1, limit=4
    $region2: #{tpu_custom_call.1} parent=1 // loop_pre_header
      _
    $region3: #{tpu_custom_call.1} parent=1 // loop_header
      %s12 = sphi 0, %s16
      %p13 = scmp.ge.s32.totalorder %s12, 4
      %s22 = sphi 0, %s24
      %s25 = sphi 0, %s22
      %s26 = sphi 0, %s25
      %s42 = sphi 0, %s26
      %s48 = sphi 0, %s50
      %s51 = sphi 0, %s48
      %s52 = sphi 0, %s51
      %s68 = sphi 0, %s52
      %s74 = sphi 0, %s76
      %s77 = sphi 0, %s74
      %s78 = sphi 0, %s77
      %s94 = sphi 0, %s78
    $region4: #{tpu_custom_call.1} parent=1 // loop_header_branch
      %15 = sbr.rel (%p13) target = $region8
    $region5: #{tpu_custom_call.1} parent=1 // loop_body
      %s17 = ssub.s32 %s12, 1
      %s18 = ssub.s32 %s12, 2
      %s19 = sadd.s32 %s12, 1
      %s20 = ssub.s32 %s12, %s19
      %p21 = scmp.eq.s32.totalorder %s20, 0
      %s23 = sadd.s32 %s22, 1
      %s24 = scalar_select %p21, %s22, %s23
      %p27 = pneg %p21
      %p28 = scmp.eq.s32.totalorder %s12, 1
      %p29 = por %p27, %p28
      %p30 = scmp.ne.s32.totalorder %s22, %s25
      %p31 = scmp.eq.s32.totalorder %s12, 0
      %p32 = por %p30, %p31
      %p33 = scmp.ne.s32.totalorder %s22, %s25
      %p34 = scmp.eq.s32.totalorder %s17, 1
      %p35 = por %p33, %p34
      %p36 = scmp.ne.s32.totalorder %s25, %s26
      %p37 = scmp.eq.s32.totalorder %s17, 0
      %p38 = por %p36, %p37
      %p39 = scmp.ne.s32.totalorder %s25, %s26
      %p40 = scmp.eq.s32.totalorder %s18, 1
      %p41 = por %p39, %p40
      %p43 = scmp.ne.s32.totalorder %s26, %s42
      %p44 = scmp.eq.s32.totalorder %s18, 0
      %p45 = por %p43, %p44
      %s46 = ssub.s32 %s12, %s19
      %p47 = scmp.eq.s32.totalorder %s46, 0
      %s49 = sadd.s32 %s48, 1
      %s50 = scalar_select %p47, %s48, %s49
      %p53 = pneg %p47
      %p54 = scmp.eq.s32.totalorder %s12, 1
      %p55 = por %p53, %p54
      %p56 = scmp.ne.s32.totalorder %s48, %s51
      %p57 = scmp.eq.s32.totalorder %s12, 0
      %p58 = por %p56, %p57
      %p59 = scmp.ne.s32.totalorder %s48, %s51
      %p60 = scmp.eq.s32.totalorder %s17, 1
      %p61 = por %p59, %p60
      %p62 = scmp.ne.s32.totalorder %s51, %s52
      %p63 = scmp.eq.s32.totalorder %s17, 0
      %p64 = por %p62, %p63
      %p65 = scmp.ne.s32.totalorder %s51, %s52
      %p66 = scmp.eq.s32.totalorder %s18, 1
      %p67 = por %p65, %p66
      %p69 = scmp.ne.s32.totalorder %s52, %s68
      %p70 = scmp.eq.s32.totalorder %s18, 0
      %p71 = por %p69, %p70
      %s72 = ssub.s32 %s12, %s19
      %p73 = scmp.eq.s32.totalorder %s72, 0
      %s75 = sadd.s32 %s74, 1
      %s76 = scalar_select %p73, %s74, %s75
      %p79 = pneg %p73
      %p80 = scmp.eq.s32.totalorder %s12, 1
      %p81 = por %p79, %p80
      %p82 = scmp.ne.s32.totalorder %s74, %s77
      %p83 = scmp.eq.s32.totalorder %s12, 0
      %p84 = por %p82, %p83
      %p85 = scmp.ne.s32.totalorder %s74, %s77
      %p86 = scmp.eq.s32.totalorder %s17, 1
      %p87 = por %p85, %p86
      %p88 = scmp.ne.s32.totalorder %s77, %s78
      %p89 = scmp.eq.s32.totalorder %s17, 0
      %p90 = por %p88, %p89
      %p91 = scmp.ne.s32.totalorder %s77, %s78
      %p92 = scmp.eq.s32.totalorder %s18, 1
      %p93 = por %p91, %p92
      %p95 = scmp.ne.s32.totalorder %s78, %s94
      %p96 = scmp.eq.s32.totalorder %s18, 0
      %p97 = por %p95, %p96
      %p98 = scmp.le.s32.totalorder 1, %s12
      %p99 = scmp.lt.s32.totalorder %s12, 3
      %p100 = pnand %p98, %p99
      %p101 = pneg %p100
      // Predicated region
      $region9: #{tpu_custom_call.1} parent=5 // pred_check
        _
      $region10: #{tpu_custom_call.1} parent=5 // pred_check_branch
        %103 = sbr.rel (%p100) target = $region12
      $region11: #{tpu_custom_call.1} parent=5 // pred_region
        %s104 = ssub.s32 %s12, 1
      $region12: #{tpu_custom_call.1} parent=5 // pred_fallthru
        _
      %p105 = scmp.lt.s32.totalorder %s12, 2
      // Predicated region
      $region13: #{tpu_custom_call.1} parent=5 // pred_check
        %p106 = pneg %p105
      $region14: #{tpu_custom_call.1} parent=5 // pred_check_branch
        %108 = sbr.rel (%p106) target = $region16
      $region15: #{tpu_custom_call.1} parent=5 // pred_region
        // Predicated region
        $region17: #{tpu_custom_call.1} parent=15 // pred_check
          %p109 = pneg %p32
        $region18: #{tpu_custom_call.1} parent=15 // pred_check_branch
          %111 = sbr.rel (%p109) target = $region20
        $region19: #{tpu_custom_call.1} parent=15 // pred_region
          %p112 = scmp.lt.s32.totalorder %s12, 1
          %s113 = scalar_select %p112, %s12, 1
          %s114 = smul.addr %s113, 4
          %s115 = scalar_lea.vmem %s0, %s114
        $region20: #{tpu_custom_call.1} parent=15 // pred_fallthru
          _
      $region16: #{tpu_custom_call.1} parent=5 // pred_fallthru
        _
      %p116 = scmp.le.s32.totalorder 1, %s12
      %p117 = scmp.lt.s32.totalorder %s12, 3
      %p118 = pnand %p116, %p117
      %p119 = pneg %p118
      // Predicated region
      $region21: #{tpu_custom_call.1} parent=5 // pred_check
        _
      $region22: #{tpu_custom_call.1} parent=5 // pred_check_branch
        %121 = sbr.rel (%p118) target = $region24
      $region23: #{tpu_custom_call.1} parent=5 // pred_region
        %s122 = ssub.s32 %s12, 1
        %p123 = scmp.lt.s32.totalorder %s17, 1
        %s124 = scalar_select %p123, %s17, 1
        %s125 = smul.addr %s124, 4
        %s126 = scalar_lea.vmem %s0, %s125
        %p127 = pneg %p38
        %p128 = pneg %p35
        %p129 = pneg %p64
        %p130 = pneg %p61
        %p131 = scmp.lt.s32.totalorder %s17, 1
        %s132 = scalar_select %p131, %s17, 1
        %s133 = smul.addr %s132, 4
        %s134 = scalar_lea.vmem %s1, %s133
        %p135 = pneg %p90
        %p136 = pneg %p87
        %s137 = sand.u32 %s77, 1
        %s138 = scalar_lea.sflag [#allocation3], %s137
        %s139 = sand.u32 %s77, 1
        %s140 = scalar_lea.vmem [#allocation2], %s139
        %p141 = scmp.lt.s32.totalorder %s17, 1
        %s142 = scalar_select %p141, %s17, 1
        %s143 = smul.addr %s142, 4
        %s144 = scalar_lea.vmem %s0, %s143
        %p145 = scmp.lt.s32.totalorder %s17, 1
        %s146 = scalar_select %p145, %s17, 1
        %s147 = smul.addr %s146, 4
        %s148 = scalar_lea.vmem %s1, %s147
        %v149 = vld [vmem:[%s144] sm:$0x7]
        %vm150 = vcmask 1042432
        %v151 = vsel %vm150, %v149, 0.0
        %152 = vadd.xlane.f32.xlu0 %v151
        %v153 = vpop.xlane.xlu0 %152
        %v154 = vrcp.pop 128.0
        %v155 = vmul.f32 %v153, %v154
        %v156 = vsub.f32 %v149, %v155
        %v157 = vmul.f32 %v156, %v156
        %v158 = vsel %vm150, %v157, 0.0
        %v159 = vrot.slane %v158, 4
        %v160 = vadd.f32 %v158, %v159
        %v161 = vrot.slane %v160, 2
        %v162 = vadd.f32 %v160, %v161
        %v163 = vrot.slane %v162, 1
        %v164 = vadd.f32 %v162, %v163
        %v165 = vrsqrt.pop %v164
        %v166 = vmul.f32 %v164, %v165
        %vm167 = vcmp.eq.f32.partialorder %v164, inf
        %v168 = vsel %vm167, %v164, %v166
        %vm169 = vcmp.eq.f32.partialorder %v164, 0.0
        %v170 = vand.u32 %v164, 2147483648
        %v171 = vsel %vm169, %v170, %v168
        %172 = vmax.xlane.f32.xlu0 %v171
        %v173 = vpop.xlane.xlu0 %172
        %v174 = vmul.f32 %v173, 2.0
        %v175 = vadd.f32 %v174, 0.0
        %v176 = vrcp.pop %v175
        %v177 = vmul.f32 %v156, %v176
        %v178 = vadd.f32 %v177, 0.5
        %v179 = vmul.f32 %v178, 16.0
        %v180 = vmax.f32 %v179, 0.0
        %v181 = vmin.f32 %v180, 15.0
        %182 = vst [vmem:[%s148] sm:$0x7] %v181
        %v183 = vcvt.f32.s32.ties.to.even %v181
        %v184 = vmul.u32 %v183, 256
        %v185 = vmul.u32 %v183, 16
        %v186 = vrot.slane %v185, 1
        %v187 = vadd.s32 %v184, %v186
        %v188 = vrot.slane %v183, 2
        %v189 = vadd.s32 %v187, %v188
        %190 = vst [vmem:[%s140] sm:$0x1] %v189
        %p191 = scmp.lt.s32.totalorder %s17, 1
        %s192 = scalar_select %p191, %s17, 1
        %s193 = smul.addr %s192, 4
        %s194 = scalar_lea.vmem %s1, %s193
        %s195 = sand.u32 %s77, 1
        %s196 = scalar_lea.sflag [#allocation3], %s195
        %s197 = sand.u32 %s77, 1
        %s198 = scalar_lea.vmem [#allocation2], %s197
        // Predicated region
        $region25: #{tpu_custom_call.1} parent=23 // pred_check
          %p199 = pneg %p61
        $region26: #{tpu_custom_call.1} parent=23 // pred_check_branch
          %201 = sbr.rel (%p199) target = $region28
        $region27: #{tpu_custom_call.1} parent=23 // pred_region
          _
        $region28: #{tpu_custom_call.1} parent=23 // pred_fallthru
          _
        // Predicated region
        $region29: #{tpu_custom_call.1} parent=23 // pred_check
          %p202 = pneg %p87
        $region30: #{tpu_custom_call.1} parent=23 // pred_check_branch
          %204 = sbr.rel (%p202) target = $region32
        $region31: #{tpu_custom_call.1} parent=23 // pred_region
          %s206 = ssub.s32 16, 16
          %207 = vsyncadd %s196, %s206
          %s208 = smul.addr %s17, 16
          %s209 = scalar_lea.hbm %s2, %s208
          %s211 = sshll.u32 %s198, 4
          %s212 = int_to_ptr.vmem [resolvable:$true] %s211
          %214 = dma.vmem_to_hbm [thread:$0]  %s212, 16, %s209, %s196
        $region32: #{tpu_custom_call.1} parent=23 // pred_fallthru
          _
      $region24: #{tpu_custom_call.1} parent=5 // pred_fallthru
        _
      %p215 = scmp.le.s32.totalorder 2, %s12
      // Predicated region
      $region33: #{tpu_custom_call.1} parent=5 // pred_check
        %p216 = pneg %p215
      $region34: #{tpu_custom_call.1} parent=5 // pred_check_branch
        %218 = sbr.rel (%p216) target = $region36
      $region35: #{tpu_custom_call.1} parent=5 // pred_region
        %s219 = ssub.s32 %s12, 2
        // Predicated region
        $region37: #{tpu_custom_call.1} parent=35 // pred_check
          %p220 = pneg %p67
        $region38: #{tpu_custom_call.1} parent=35 // pred_check_branch
          %222 = sbr.rel (%p220) target = $region40
        $region39: #{tpu_custom_call.1} parent=35 // pred_region
          %p223 = scmp.lt.s32.totalorder %s18, 1
          %s224 = scalar_select %p223, %s18, 1
          %s225 = smul.addr %s224, 4
          %s226 = scalar_lea.vmem %s1, %s225
        $region40: #{tpu_custom_call.1} parent=35 // pred_fallthru
          _
        // Predicated region
        $region41: #{tpu_custom_call.1} parent=35 // pred_check
          %p227 = pneg %p93
        $region42: #{tpu_custom_call.1} parent=35 // pred_check_branch
          %229 = sbr.rel (%p227) target = $region44
        $region43: #{tpu_custom_call.1} parent=35 // pred_region
          %s230 = sand.u32 %s78, 1
          %s231 = scalar_lea.sflag [#allocation3], %s230
          %s232 = sand.u32 %s78, 1
          %s233 = scalar_lea.vmem [#allocation2], %s232
          %234 = dma.done %s231, 16
        $region44: #{tpu_custom_call.1} parent=35 // pred_fallthru
          _
      $region36: #{tpu_custom_call.1} parent=5 // pred_fallthru
        _
    $region6: #{tpu_custom_call.1} parent=1 // loop_footer
      %s16 = sadd.s32 1, %s12
    $region7: #{tpu_custom_call.1} parent=1 // loop_footer_branch
      %11 = sbr.rel target = $region3
    $region8: #{tpu_custom_call.1} parent=1 // loop_exit
      _
    %235 = vsyncpa [#allocation3], 1
    %s236 = scalar_lea.sflag [#allocation3], 1
    %237 = vsyncpa %s236, 1

</llo_original>
